<compile_context>
chip_gen: v5e
topology: v5e:2x2
jax: 0.10.0
libtpu: 0.0.40
codegen_flags: <defaults>
</compile_context>

<pallas_src>
import functools

import jax
import jax.numpy as jnp
from jax.experimental import pallas as pl
from jax.experimental.pallas import tpu as pltpu


def _round_up(x: int, m: int) -> int:
    return ((x + m - 1) // m) * m


def _fast_rcnn_fused_kernel(x_ref, w_ref, b_ref, cls_ref, bbox_ref,
                            *, num_classes: int, cls_pad: int,
                            apply_softmax: bool):
    # x: (TN, Dpad) bf16/f32, w: (Dpad, Cpad+Bpad) bf16/f32, b: (1, Cpad+Bpad) f32.
    x = x_ref[...]

    # Single fused MXU matmul with f32 accumulation, bias added in f32.
    fused = jnp.dot(x, w_ref[...], preferred_element_type=jnp.float32) + b_ref[...]

    # Split at the 128-aligned boundary (tile-aligned slice -> no relayout cost).
    logits = fused[:, :cls_pad]          # (TN, Cpad) classification logits
    bbox = fused[:, cls_pad:]            # (TN, Bpad) bbox deltas

    if apply_softmax:
        # Mask out the zero-padded class columns so they do not pollute max/sum.
        col = jax.lax.broadcasted_iota(jnp.int32, logits.shape, 1)
        valid = col < num_classes
        masked = jnp.where(valid, logits, -jnp.inf)
        m = jnp.max(masked, axis=1, keepdims=True)
        e = jnp.where(valid, jnp.exp(logits - m), 0.0)
        denom = jnp.sum(e, axis=1, keepdims=True)
        cls_ref[...] = e * pl.reciprocal(denom, approx=True)
    else:
        # Training mode of the original module: raw logits (no softmax).
        cls_ref[...] = logits

    bbox_ref[...] = bbox


def make_fast_rcnn_forward(w_cls, b_cls, w_bbox, b_bbox, *,
                           block_n: int = 256,
                           matmul_dtype=jnp.bfloat16,
                           training: bool = False):
    """One-time host-side weight prep; returns a jit-able forward(x) -> (cls, bbox)."""
    C, D = w_cls.shape
    B = w_bbox.shape[0]

    d_pad = _round_up(D, 128)
    c_pad = _round_up(C, 128)
    b_pad = _round_up(B, 128)
    w_out = c_pad + b_pad

    # Fused, transposed, zero-padded weight (done once, outside the hot path).
    w_fused = jnp.zeros((d_pad, w_out), jnp.float32)
    w_fused = w_fused.at[:D, :C].set(jnp.asarray(w_cls, jnp.float32).T)
    w_fused = w_fused.at[:D, c_pad:c_pad + B].set(jnp.asarray(w_bbox, jnp.float32).T)
    w_fused = w_fused.astype(matmul_dtype)

    b_fused = jnp.zeros((1, w_out), jnp.float32)
    b_fused = b_fused.at[0, :C].set(jnp.asarray(b_cls, jnp.float32))
    b_fused = b_fused.at[0, c_pad:c_pad + B].set(jnp.asarray(b_bbox, jnp.float32))

    kernel = functools.partial(_fast_rcnn_fused_kernel,
                               num_classes=C, cls_pad=c_pad,
                               apply_softmax=not training)

    def forward(x):
        if x.ndim == 4:                      # (N, D, 1, 1) -> (N, D) via reshape
            x = x.reshape(x.shape[0], -1)
        n, d = x.shape
        assert d == D, f"feature dim mismatch: {d} vs {D}"

        tn = min(block_n, _round_up(n, 8))   # row tile (multiple of 8)
        n_pad = _round_up(n, tn)

        xp = jnp.pad(x.astype(matmul_dtype), ((0, n_pad - n), (0, d_pad - D)))

        cost = pl.CostEstimate(
            flops=2 * n_pad * d_pad * w_out,
            transcendentals=n_pad * c_pad,
            bytes_accessed=(n_pad * d_pad * jnp.dtype(matmul_dtype).itemsize
                            + d_pad * w_out * jnp.dtype(matmul_dtype).itemsize
                            + w_out * 4
                            + n_pad * w_out * 4),
        )

        cls_p, bbox_p = pl.pallas_call(
            kernel,
            out_shape=(jax.ShapeDtypeStruct((n_pad, c_pad), jnp.float32),
                       jax.ShapeDtypeStruct((n_pad, b_pad), jnp.float32)),
            grid=(n_pad // tn,),
            in_specs=[
                pl.BlockSpec((tn, d_pad), lambda i: (i, 0)),     # activations: tiled over N
                pl.BlockSpec((d_pad, w_out), lambda i: (0, 0)),  # fused weight: resident
                pl.BlockSpec((1, w_out), lambda i: (0, 0)),      # fused bias: resident
            ],
            out_specs=(pl.BlockSpec((tn, c_pad), lambda i: (i, 0)),
                       pl.BlockSpec((tn, b_pad), lambda i: (i, 0))),
            compiler_params=pltpu.CompilerParams(
                dimension_semantics=("parallel",)),
            cost_estimate=cost,
        )(xp, w_fused, b_fused)

        return cls_p[:n, :C], bbox_p[:n, :B]

    return forward


def fast_rcnn_outputs(x, w_cls, b_cls, w_bbox, b_bbox, **kwargs):
    """Convenience one-shot wrapper (prefer make_fast_rcnn_forward to hoist prep)."""
    return make_fast_rcnn_forward(w_cls, b_cls, w_bbox, b_bbox, **kwargs)(x)


def _reference(x, w_cls, b_cls, w_bbox, b_bbox):
    if x.ndim == 4:
        x = x.reshape(x.shape[0], -1)
    logits = x @ w_cls.T + b_cls
    cls = jax.nn.softmax(logits, axis=1)
    bbox = x @ w_bbox.T + b_bbox
    return cls, bbox


if __name__ == "__main__":
    # Small, deterministic synthetic setup.
    N = 8            # number of RoIs (batch)
    dim_in = 32      # feature dim
    num_classes = 8  # cfg.MODEL.NUM_CLASSES
    bbox_out = 4 * num_classes  # CLS_AGNOSTIC_BBOX_REG = False

    key = jax.random.PRNGKey(0)
    k_x, k_wc, k_wb = jax.random.split(key, 3)

    # Input mimics the typical 4-D (N, dim_in, 1, 1) head input.
    x = jax.random.normal(k_x, (N, dim_in, 1, 1), dtype=jnp.float32)

    # _init_weights(): normal(std=0.01)/normal(std=0.001), zero biases.
    w_cls = 0.01 * jax.random.normal(k_wc, (num_classes, dim_in), dtype=jnp.float32)
    b_cls = jnp.zeros((num_classes,), dtype=jnp.float32)
    w_bbox = 0.001 * jax.random.normal(k_wb, (bbox_out, dim_in), dtype=jnp.float32)
    b_bbox = jnp.zeros((bbox_out,), dtype=jnp.float32)

    # Weight prep hoisted out of the per-call path; only forward(x) is jitted.
    forward = jax.jit(make_fast_rcnn_forward(w_cls, b_cls, w_bbox, b_bbox))
    cls_score, bbox_pred = forward(x)
    jax.block_until_ready((cls_score, bbox_pred))

    # Correctness check against plain-JAX f32 reference.
    # Tolerances account for bf16 matmul operands + approx reciprocal (inference head).
    cls_ref, bbox_ref = _reference(x, w_cls, b_cls, w_bbox, b_bbox)
    assert cls_score.shape == (N, num_classes)
    assert bbox_pred.shape == (N, bbox_out)
    assert jnp.allclose(cls_score, cls_ref, atol=3e-3, rtol=3e-2)
    assert jnp.allclose(bbox_pred, bbox_ref, atol=3e-3, rtol=3e-2)
    assert jnp.allclose(jnp.sum(cls_score, axis=1), 1.0, atol=5e-3)

    print("KERNEL_OK")
</pallas_src>

<mosaic_0001>
module attributes {stable_mosaic.version = 11 : i64} {
  func.func @_fast_rcnn_fused_kernel(%arg0: i32, %arg1: memref<8x128xbf16, #tpu.memory_space<vmem>>, %arg2: memref<128x256xbf16, #tpu.memory_space<vmem>>, %arg3: memref<1x256xf32, #tpu.memory_space<vmem>>, %arg4: memref<8x128xf32, #tpu.memory_space<vmem>>, %arg5: memref<8x128xf32, #tpu.memory_space<vmem>>) attributes {dimension_semantics = [#tpu.dimension_semantics<parallel>], iteration_bounds = array<i64: 1>, scalar_prefetch = 0 : i64, scratch_operands = 0 : i64, tpu.core_type = #tpu.core_type<tc>, window_params = [{transform_indices = @transform_0, window_bounds = array<i64: 8, 128>}, {pipeline_mode = #tpu.pipeline_mode<synchronous>, transform_indices = @transform_1, window_bounds = array<i64: 128, 256>}, {pipeline_mode = #tpu.pipeline_mode<synchronous>, transform_indices = @transform_2, window_bounds = array<i64: 1, 256>}, {transform_indices = @transform_3, window_bounds = array<i64: 8, 128>}, {transform_indices = @transform_4, window_bounds = array<i64: 8, 128>}]} {
    %c0 = arith.constant 0 : index
    %c0_0 = arith.constant 0 : index
    %0 = vector.load %arg1[%c0, %c0_0] : memref<8x128xbf16, #tpu.memory_space<vmem>>, vector<8x128xbf16>
    %c0_1 = arith.constant 0 : index
    %c0_2 = arith.constant 0 : index
    %1 = vector.load %arg2[%c0_1, %c0_2] : memref<128x256xbf16, #tpu.memory_space<vmem>>, vector<128x256xbf16>
    %cst = arith.constant dense<0.000000e+00> : vector<8x256xf32>
    %2 = tpu.matmul %0, %1, %cst {dimension_numbers = #tpu.dot_dimension_numbers<[1], [0], [0], [1], [0, 0, 1, 1], [], []>} : vector<8x128xbf16>, vector<128x256xbf16>, vector<8x256xf32> -> vector<8x256xf32>
    %c0_3 = arith.constant 0 : index
    %c0_4 = arith.constant 0 : index
    %3 = vector.load %arg3[%c0_3, %c0_4] : memref<1x256xf32, #tpu.memory_space<vmem>>, vector<1x256xf32>
    %4 = vector.broadcast %3 : vector<1x256xf32> to vector<8x256xf32>
    %5 = arith.addf %2, %4 : vector<8x256xf32>
    %6 = vector.extract_strided_slice %5 {offsets = [0, 0], sizes = [8, 128], strides = [1, 1]} : vector<8x256xf32> to vector<8x128xf32>
    %7 = vector.extract_strided_slice %5 {offsets = [0, 128], sizes = [8, 128], strides = [1, 1]} : vector<8x256xf32> to vector<8x128xf32>
    %8 = tpu.iota {dimensions = array<i32: 1>} : vector<8x128xi32>
    %c8_i32 = arith.constant 8 : i32
    %9 = vector.broadcast %c8_i32 : i32 to vector<8x128xi32>
    %10 = arith.cmpi slt, %8, %9 : vector<8x128xi32>
    %cst_5 = arith.constant 0xFF800000 : f32
    %11 = vector.broadcast %cst_5 : f32 to vector<8x128xf32>
    %12 = arith.select %10, %6, %11 : vector<8x128xi1>, vector<8x128xf32>
    %cst_6 = arith.constant dense<0xFF800000> : vector<8xf32>
    %13 = vector.multi_reduction <maximumf>, %12, %cst_6 [1] : vector<8x128xf32> to vector<8xf32>
    %14 = vector.shape_cast %13 : vector<8xf32> to vector<8x1xf32>
    %15 = vector.broadcast %14 : vector<8x1xf32> to vector<8x128xf32>
    %16 = arith.subf %6, %15 : vector<8x128xf32>
    %17 = math.exp %16 : vector<8x128xf32>
    %cst_7 = arith.constant 0.000000e+00 : f32
    %18 = vector.broadcast %cst_7 : f32 to vector<8x128xf32>
    %19 = arith.select %10, %17, %18 : vector<8x128xi1>, vector<8x128xf32>
    %cst_8 = arith.constant dense<0.000000e+00> : vector<8xf32>
    %20 = vector.multi_reduction <add>, %19, %cst_8 [1] : vector<8x128xf32> to vector<8xf32>
    %21 = vector.shape_cast %20 : vector<8xf32> to vector<8x1xf32>
    %22 = tpu.reciprocal %21 {approx = true} : vector<8x1xf32> -> vector<8x1xf32>
    %23 = vector.broadcast %22 : vector<8x1xf32> to vector<8x128xf32>
    %24 = arith.mulf %19, %23 : vector<8x128xf32>
    %c0_9 = arith.constant 0 : index
    %c0_10 = arith.constant 0 : index
    %25 = vector.load %arg4[%c0_9, %c0_10] : memref<8x128xf32, #tpu.memory_space<vmem>>, vector<8x128xf32>
    tpu.vector_store %arg4[%c0_9, %c0_10], %24 {strides = array<i32>} : memref<8x128xf32, #tpu.memory_space<vmem>>, vector<8x128xf32>,
    %c0_11 = arith.constant 0 : index
    %c0_12 = arith.constant 0 : index
    %26 = vector.load %arg5[%c0_11, %c0_12] : memref<8x128xf32, #tpu.memory_space<vmem>>, vector<8x128xf32>
    tpu.vector_store %arg5[%c0_11, %c0_12], %7 {strides = array<i32>} : memref<8x128xf32, #tpu.memory_space<vmem>>, vector<8x128xf32>,
    return
  }
  func.func @transform_0(%arg0: i32) -> (i32, i32) {
    %c0_i32 = arith.constant 0 : i32
    %c0_i32_0 = arith.constant 0 : i32
    return %arg0, %c0_i32 : i32, i32
  }
  func.func @transform_1(%arg0: i32) -> (i32, i32) {
    %c0_i32 = arith.constant 0 : i32
    %c0_i32_0 = arith.constant 0 : i32
    %c0_i32_1 = arith.constant 0 : i32
    return %c0_i32, %c0_i32_0 : i32, i32
  }
  func.func @transform_2(%arg0: i32) -> (i32, i32) {
    %c0_i32 = arith.constant 0 : i32
    %c0_i32_0 = arith.constant 0 : i32
    %c0_i32_1 = arith.constant 0 : i32
    return %c0_i32, %c0_i32_0 : i32, i32
  }
  func.func @transform_3(%arg0: i32) -> (i32, i32) {
    %c0_i32 = arith.constant 0 : i32
    %c0_i32_0 = arith.constant 0 : i32
    return %arg0, %c0_i32 : i32, i32
  }
  func.func @transform_4(%arg0: i32) -> (i32, i32) {
    %c0_i32 = arith.constant 0 : i32
    %c0_i32_0 = arith.constant 0 : i32
    return %arg0, %c0_i32 : i32, i32
  }
}

</mosaic_0001>

<llo_original>
// kernel: forward.1
$region0: #{forward.1}
  #allocation0 [shape = 'u32[]', space=smem, size = 0x4, offset = 0x4, fixed_abs, tag = 'smem constant byte address 0x4 - core index']
  #allocation1 [shape = 'u32[72,128]{1,0:T(1,128)}', space=vmem, size = 0x9000, scoped, tag = 'internal scratch']
  %s0 = inlined_call_operand.vmem [shape: bf16[8,128], index: 0, kind: input, shape index: {}]
  %s1 = inlined_call_operand.hbm [shape: bf16[128,256], index: 1, kind: input, shape index: {}]
  %s2 = inlined_call_operand.vmem [shape: f32[1,256], index: 2, kind: input, shape index: {}]
  %s3 = inlined_call_operand.hbm [shape: f32[8,128], index: 3, kind: output, shape index: {0}]
  %s4 = inlined_call_operand.hbm [shape: f32[8,128], index: 4, kind: output, shape index: {1}]
  %5 = xla_tuple %s3, %s4
  %s6 = sld [smem:[#allocation0]]
  $region34: #{forward.1} parent=0
    _
  %s8 = ssub.s32 1, %s6
  %s9 = scalar_select 0, %s8, %s6
  $region1: #{forward.1} parent=0
    #allocation2 [shape = 'u8[65536]{0}', space=vmem, size = 0x10000, scoped, tag = 'input window, operand 1, single buffered']
    #allocation3 [shape = 's32[1]{0}', space=sflag, size = 0x4, scoped, tag = 'scoped memory for forward.1']
    #allocation4 [shape = 's32[1]{0}', space=sflag, size = 0x4, scoped, tag = 'scoped memory for forward.1']
    #allocation5 [shape = 'u8[4096]{0}', space=vmem, size = 0x1000, scoped, tag = 'output window, operand 0, single buffered']
    #allocation6 [shape = 'u8[4096]{0}', space=vmem, size = 0x1000, scoped, tag = 'output window, operand 1, single buffered']
    #allocation7 [shape = 's32[1]{0}', space=sflag, size = 0x4, scoped, tag = 'scoped memory for forward.1']
    %10 = vsyncpa [#allocation3], 0
    %11 = vsyncpa [#allocation4], 0
    %12 = vsyncpa [#allocation7], 0
    // Predicated region
    $region2: #{forward.1} parent=1 // pred_check
      _
    $region3: #{forward.1} parent=1 // pred_check_branch
      %14 = sbr.rel (0) target = $region5
    $region4: #{forward.1} parent=1 // pred_region
      _
    $region5: #{forward.1} parent=1 // pred_fallthru
      _
    // Predicated region
    $region6: #{forward.1} parent=1 // pred_check
      _
    $region7: #{forward.1} parent=1 // pred_check_branch
      %16 = sbr.rel (0) target = $region9
    $region8: #{forward.1} parent=1 // pred_region
      %18 = vsyncadd [#allocation3], 0
      %s19 = sshll.u32 %s1, 4
      %s20 = int_to_ptr.hbm [resolvable:$true] %s19
      %s21 = sshll.u32 [#allocation2], 4
      %s22 = int_to_ptr.vmem [resolvable:$true] %s21
      %27 = dma.hbm_to_vmem [thread:$0]  %s20, 2048, %s22, [#allocation3], 128, 128, 8
    $region9: #{forward.1} parent=1 // pred_fallthru
      _
    // Predicated region
    $region10: #{forward.1} parent=1 // pred_check
      _
    $region11: #{forward.1} parent=1 // pred_check_branch
      %29 = sbr.rel (0) target = $region13
    $region12: #{forward.1} parent=1 // pred_region
      _
    $region13: #{forward.1} parent=1 // pred_fallthru
      _
    // Predicated region
    $region14: #{forward.1} parent=1 // pred_check
      _
    $region15: #{forward.1} parent=1 // pred_check_branch
      %31 = sbr.rel (0) target = $region17
    $region16: #{forward.1} parent=1 // pred_region
      %33 = dma.done [#allocation3], 2048
    $region17: #{forward.1} parent=1 // pred_fallthru
      _
    %v34 = vld [vmem:[%s0] sm:$0xf]
    %v35 = vld [vmem:[#allocation2] sm:$0xff]
    %v36 = vld [vmem:[#allocation2 + $0x8] sm:$0xff]
    %v37 = vld [vmem:[#allocation2 + $0x10] sm:$0xff]
    %v38 = vld [vmem:[#allocation2 + $0x18] sm:$0xff]
    %v39 = vld [vmem:[#allocation2 + $0x20] sm:$0xff]
    %v40 = vld [vmem:[#allocation2 + $0x28] sm:$0xff]
    %v41 = vld [vmem:[#allocation2 + $0x30] sm:$0xff]
    %v42 = vld [vmem:[#allocation2 + $0x38] sm:$0xff]
    %v43 = vld [vmem:[#allocation2 + $0x40] sm:$0xff]
    %v44 = vld [vmem:[#allocation2 + $0x48] sm:$0xff]
    %v45 = vld [vmem:[#allocation2 + $0x50] sm:$0xff]
    %v46 = vld [vmem:[#allocation2 + $0x58] sm:$0xff]
    %v47 = vld [vmem:[#allocation2 + $0x60] sm:$0xff]
    %v48 = vld [vmem:[#allocation2 + $0x68] sm:$0xff]
    %v49 = vld [vmem:[#allocation2 + $0x70] sm:$0xff]
    %v50 = vld [vmem:[#allocation2 + $0x78] sm:$0xff]
    %v51 = vld [vmem:[%s2] sm:$0x3]
    %v53 = vperm.slane %v51, 0
    %v54 = vperm.slane %v51, 1
    %v73 = vunpack.c.l.b16 %v35
    %v74 = vunpack.c.h.b16 %v35
    %v75 = vunpack.c.l.b16 %v36
    %v76 = vunpack.c.h.b16 %v36
    %v77 = vunpack.c.l.b16 %v37
    %v78 = vunpack.c.h.b16 %v37
    %v79 = vunpack.c.l.b16 %v38
    %v80 = vunpack.c.h.b16 %v38
    %v81 = vunpack.c.l.b16 %v39
    %v82 = vunpack.c.h.b16 %v39
    %v83 = vunpack.c.l.b16 %v40
    %v84 = vunpack.c.h.b16 %v40
    %v85 = vunpack.c.l.b16 %v41
    %v86 = vunpack.c.h.b16 %v41
    %v87 = vunpack.c.l.b16 %v42
    %v88 = vunpack.c.h.b16 %v42
    %v89 = vunpack.c.l.b16 %v43
    %v90 = vunpack.c.h.b16 %v43
    %v91 = vunpack.c.l.b16 %v44
    %v92 = vunpack.c.h.b16 %v44
    %v93 = vunpack.c.l.b16 %v45
    %v94 = vunpack.c.h.b16 %v45
    %v95 = vunpack.c.l.b16 %v46
    %v96 = vunpack.c.h.b16 %v46
    %v97 = vunpack.c.l.b16 %v47
    %v98 = vunpack.c.h.b16 %v47
    %v99 = vunpack.c.l.b16 %v48
    %v100 = vunpack.c.h.b16 %v48
    %v101 = vunpack.c.l.b16 %v49
    %v102 = vunpack.c.h.b16 %v49
    %v103 = vunpack.c.l.b16 %v50
    %v104 = vunpack.c.h.b16 %v50
    %v105 = vpack.c.b16 %v75, %v73
    %v106 = vpack.c.b16 %v76, %v74
    %v107 = vpack.c.b16 %v79, %v77
    %v108 = vpack.c.b16 %v80, %v78
    %v109 = vpack.c.b16 %v83, %v81
    %v110 = vpack.c.b16 %v84, %v82
    %v111 = vpack.c.b16 %v87, %v85
    %v112 = vpack.c.b16 %v88, %v86
    %v113 = vpack.c.b16 %v91, %v89
    %v114 = vpack.c.b16 %v92, %v90
    %v115 = vpack.c.b16 %v95, %v93
    %v116 = vpack.c.b16 %v96, %v94
    %v117 = vpack.c.b16 %v99, %v97
    %v118 = vpack.c.b16 %v100, %v98
    %v119 = vpack.c.b16 %v103, %v101
    %v120 = vpack.c.b16 %v104, %v102
    %137 = vmatpush.bf16.msra.mxu0 %v119
    %138 = vmatpush.bf16.msra.mxu0 %v117
    %139 = vmatpush.bf16.msra.mxu0 %v115
    %140 = vmatpush.bf16.msra.mxu0 %v113
    %141 = vmatpush.bf16.msra.mxu0 %v111
    %142 = vmatpush.bf16.msra.mxu0 %v109
    %143 = vmatpush.bf16.msra.mxu0 %v107
    %144 = vmatpush.bf16.msra.mxu0 %v105
    %145 = vmatmul.bf16.gmra.mxu0 %v34
    %v146 = vpop.f32.mrf.mxu0
    %v147 = vadd.f32 %v53, %v146
    %v148 = vpop.f32.mrf.mxu0
    %149 = vdwg.mxu0
    %150 = vmatpush.bf16.msra.mxu0 %v120
    %151 = vmatpush.bf16.msra.mxu0 %v118
    %152 = vmatpush.bf16.msra.mxu0 %v116
    %153 = vmatpush.bf16.msra.mxu0 %v114
    %154 = vmatpush.bf16.msra.mxu0 %v112
    %155 = vmatpush.bf16.msra.mxu0 %v110
    %156 = vmatpush.bf16.msra.mxu0 %v108
    %157 = vmatpush.bf16.msra.mxu0 %v106
    %158 = vmatmul.bf16.gmra.mxu0 %v34
    %v159 = vpop.f32.mrf.mxu0
    %v160 = vadd.f32 %v54, %v159
    %v161 = vpop.f32.mrf.mxu0
    %162 = vdwg.mxu0
    %v163 = vlaneseq
    %v164 = vand.u32 %v163, 127
    %vm165 = vcmp.lt.s32.totalorder %v164, 8
    %v166 = vsel %vm165, %v147, -inf
    %167 = vmax.xlane.f32.xlu0 %v166
    %v168 = vpop.xlane.xlu0 %167
    %v169 = vsub.f32 %v147, %v168
    %v170 = vmul.f32 %v169, 1.442695
    %v171 = vpow.pop %v170
    %v172 = vsel %vm165, %v171, 0.0
    %173 = vadd.xlane.f32.xlu0 %v172
    %v174 = vpop.xlane.xlu0 %173
    %v175 = vrcp.pop %v174
    %v176 = vmul.f32 %v172, %v175
    %177 = vst [vmem:[#allocation5] sm:$0xff] %v176
    %178 = vst [vmem:[#allocation6] sm:$0xff] %v160
    // Predicated region
    $region18: #{forward.1} parent=1 // pred_check
      _
    $region19: #{forward.1} parent=1 // pred_check_branch
      %180 = sbr.rel (0) target = $region21
    $region20: #{forward.1} parent=1 // pred_region
      %182 = vsyncadd [#allocation4], 0
      %s184 = sshll.u32 [#allocation5], 4
      %s185 = int_to_ptr.vmem [resolvable:$true] %s184
      %s186 = sshll.u32 %s3, 4
      %s187 = int_to_ptr.hbm [resolvable:$true] %s186
      %189 = dma.vmem_to_hbm [thread:$0]  %s185, 128, %s187, [#allocation4]
    $region21: #{forward.1} parent=1 // pred_fallthru
      _
    // Predicated region
    $region22: #{forward.1} parent=1 // pred_check
      _
    $region23: #{forward.1} parent=1 // pred_check_branch
      %191 = sbr.rel (0) target = $region25
    $region24: #{forward.1} parent=1 // pred_region
      %193 = vsyncadd [#allocation7], 0
      %s195 = sshll.u32 [#allocation6], 4
      %s196 = int_to_ptr.vmem [resolvable:$true] %s195
      %s197 = sshll.u32 %s4, 4
      %s198 = int_to_ptr.hbm [resolvable:$true] %s197
      %200 = dma.vmem_to_hbm [thread:$0]  %s196, 128, %s198, [#allocation7]
    $region25: #{forward.1} parent=1 // pred_fallthru
      _
    // Predicated region
    $region26: #{forward.1} parent=1 // pred_check
      _
    $region27: #{forward.1} parent=1 // pred_check_branch
      %202 = sbr.rel (0) target = $region29
    $region28: #{forward.1} parent=1 // pred_region
      %204 = dma.done [#allocation4], 128
    $region29: #{forward.1} parent=1 // pred_fallthru
      _
    // Predicated region
    $region30: #{forward.1} parent=1 // pred_check
      _
    $region31: #{forward.1} parent=1 // pred_check_branch
      %206 = sbr.rel (0) target = $region33
    $region32: #{forward.1} parent=1 // pred_region
      %208 = dma.done [#allocation7], 128
    $region33: #{forward.1} parent=1 // pred_fallthru
      _
    %209 = vsyncpa [#allocation3], 1
    %210 = vsyncpa [#allocation4], 1
    %211 = vsyncpa [#allocation7], 1

</llo_original>
